<compile_context>
chip_gen: v6e
topology: v6e:2x2x1
jax: 0.10.0
libtpu: 0.0.40
codegen_flags: <defaults>
</compile_context>

<pallas_src>
import functools
import math

import jax
import jax.numpy as jnp
from jax.experimental import pallas as pl
from jax.experimental.pallas import tpu as pltpu


_ACTS = {
    "tanh": jnp.tanh,
    "relu": lambda v: jnp.maximum(v, 0.0),
    "sigmoid": jax.nn.sigmoid,
}


def _fused_mlp_kernel(*refs, num_layers, hidden_act, output_act):
    """Whole MLP for one batch tile; activations never leave VMEM.

    refs = (x_ref, w0, b0, w1, b1, ..., w_{L-1}, b_{L-1}, o_ref)

    The MXU consumes the weights' dtype (f32 or bf16) with f32 accumulation;
    bias add and activations are always computed in f32 (safe on v5e, which has
    no bf16 VPU/EUP path).
    """
    x_ref = refs[0]
    o_ref = refs[1 + 2 * num_layers]

    h = x_ref[...].astype(jnp.float32)
    for layer in range(num_layers):
        w_ref = refs[1 + 2 * layer]
        b_ref = refs[2 + 2 * layer]
        y = jnp.dot(h.astype(w_ref.dtype), w_ref[...],
                    preferred_element_type=jnp.float32)
        y = y + b_ref[...].astype(jnp.float32)      # (1, out) broadcasts over batch
        act = hidden_act if layer < num_layers - 1 else output_act
        if act is not None:
            y = _ACTS[act](y)
        h = y
    o_ref[...] = h.astype(o_ref.dtype)


def _pick_tile_b(batch):
    """Batch tile: multiple of 8, <= 256, and >= 2 grid tiles when possible so
    the parallel grid axis can be sharded across v7x's two TensorCores."""
    if batch <= 8:
        return batch
    return int(min(256, max(8, (((batch + 1) // 2) // 8) * 8)))


def mlp_forward(x, params, activation="tanh", output_activation=None,
                out_squeeze=False, compute_dtype=None, tile_b=None):
    """Fused MLP forward pass: one pallas_call for the whole layer stack.

    x: (B, Din).  params: list of (W, b) with W stored (in, out) and b (out,).
    `activation` / `output_activation` are None or one of "tanh"/"relu"/"sigmoid".
    Dropout is NOT applied (eval-mode / dropout_layers=None semantics).
    # TODO(synk): train-mode dropout (dropout_layers/dropout_p) via pltpu.prng_*.
    """
    assert x.ndim == 2
    B, Din = x.shape
    num_layers = len(params)
    Dout = params[-1][0].shape[1]
    out_dtype = x.dtype
    if compute_dtype is None:
        compute_dtype = x.dtype
    if tile_b is None:
        tile_b = _pick_tile_b(B)
    grid_b = pl.cdiv(B, tile_b)

    # Flatten inputs (x, then w/b per layer) + build specs and cost estimate.
    inputs = [x]
    in_specs = [pl.BlockSpec((tile_b, Din), lambda i: (i, 0))]
    flops = 0
    transcendentals = 0
    bytes_accessed = x.size * x.dtype.itemsize + B * Dout * jnp.dtype(out_dtype).itemsize
    vmem_est = 2 * tile_b * Din * x.dtype.itemsize          # x tile (double-buffered)
    vmem_est += 2 * tile_b * Dout * jnp.dtype(out_dtype).itemsize  # out tile

    for layer, (w, b) in enumerate(params):
        din_l, dout_l = w.shape
        w = w.astype(compute_dtype)                 # MXU input dtype (f32 or bf16)
        b = b.astype(jnp.float32).reshape(1, dout_l)  # f32 epilogue bias
        inputs += [w, b]
        in_specs += [
            pl.BlockSpec((din_l, dout_l), lambda i: (0, 0)),  # resident across grid
            pl.BlockSpec((1, dout_l), lambda i: (0, 0)),
        ]
        flops += 2 * B * din_l * dout_l
        act = activation if layer < num_layers - 1 else output_activation
        if act in ("tanh", "sigmoid"):
            transcendentals += B * dout_l
        bytes_accessed += w.size * w.dtype.itemsize + b.size * 4
        vmem_est += 2 * (w.size * w.dtype.itemsize + b.size * 4)
        vmem_est += 2 * tile_b * dout_l * 4          # f32 intermediate activation

    # Generous but bounded scoped-VMEM limit (v7x physical VMEM is 64 MiB).
    vmem_limit = int(min(max(2 * vmem_est + (1 << 20), 16 << 20), 64 << 20))

    kernel = functools.partial(
        _fused_mlp_kernel,
        num_layers=num_layers,
        hidden_act=activation,
        output_act=output_activation,
    )

    out = pl.pallas_call(
        kernel,
        out_shape=jax.ShapeDtypeStruct((B, Dout), out_dtype),
        grid=(grid_b,),
        in_specs=in_specs,
        out_specs=pl.BlockSpec((tile_b, Dout), lambda i: (i, 0)),
        compiler_params=pltpu.CompilerParams(
            dimension_semantics=("parallel",),      # batch tiles -> megacore on v7x
            vmem_limit_bytes=vmem_limit,
        ),
        cost_estimate=pl.CostEstimate(
            flops=flops,
            transcendentals=transcendentals,
            bytes_accessed=bytes_accessed,
        ),
    )(*inputs)

    if out_squeeze:
        out = jnp.squeeze(out)
    return out


def init_mlp_params(key, input_size, output_size, hidden_layer_sizes):
    """Deterministic PyTorch-style uniform(-1/sqrt(fan_in), 1/sqrt(fan_in)) init."""
    layer_sizes = [input_size] + list(hidden_layer_sizes) + [output_size]
    params = []
    for i, out_f in enumerate(layer_sizes[1:]):
        in_f = layer_sizes[i]
        key, kw, kb = jax.random.split(key, 3)
        bound = 1.0 / math.sqrt(in_f)
        # stored already transposed relative to PyTorch: (in_f, out_f)
        w = jax.random.uniform(kw, (in_f, out_f), jnp.float32, -bound, bound)
        b = jax.random.uniform(kb, (out_f,), jnp.float32, -bound, bound)
        params.append((w, b))
    return params


if __name__ == "__main__":
    # MLP(input_size=16, output_size=4, hidden_layer_sizes=[32, 32]), batch=64
    # (batch > tile so the parallel grid axis actually has >1 tile).
    key = jax.random.PRNGKey(0)
    k_params, k_x = jax.random.split(key)

    input_size, output_size, hidden = 16, 4, [32, 32]
    batch = 64

    params = init_mlp_params(k_params, input_size, output_size, hidden)
    x = jax.random.normal(k_x, (batch, input_size), jnp.float32)

    # --- f32 path: exact nn.Linear/tanh semantics -------------------------------
    out = mlp_forward(x, params, activation="tanh",
                      output_activation=None, out_squeeze=False)
    out = jax.block_until_ready(out)

    # pure-JAX reference
    ref = x
    for (w, b) in params[:-1]:
        ref = jnp.tanh(ref @ w + b)
    w, b = params[-1]
    ref = ref @ w + b

    assert out.shape == (batch, output_size)
    assert jnp.allclose(out, ref, atol=1e-5, rtol=1e-5)

    # --- bf16-fed MXU path (f32 accumulate + f32 bias/tanh): looser tolerance ----
    out_bf16 = mlp_forward(x, params, activation="tanh", output_activation=None,
                           compute_dtype=jnp.bfloat16)
    out_bf16 = jax.block_until_ready(out_bf16)
    assert out_bf16.shape == (batch, output_size)
    assert jnp.allclose(out_bf16, ref, atol=5e-2, rtol=5e-2)

    print("KERNEL_OK")
</pallas_src>

<mosaic_0001>
module attributes {stable_mosaic.version = 11 : i64} {
  func.func @_fused_mlp_kernel(%arg0: i32, %arg1: memref<32x16xf32, #tpu.memory_space<vmem>>, %arg2: memref<16x32xf32, #tpu.memory_space<vmem>>, %arg3: memref<1x32xf32, #tpu.memory_space<vmem>>, %arg4: memref<32x32xf32, #tpu.memory_space<vmem>>, %arg5: memref<1x32xf32, #tpu.memory_space<vmem>>, %arg6: memref<32x4xf32, #tpu.memory_space<vmem>>, %arg7: memref<1x4xf32, #tpu.memory_space<vmem>>, %arg8: memref<32x4xf32, #tpu.memory_space<vmem>>) attributes {dimension_semantics = [#tpu.dimension_semantics<parallel>], iteration_bounds = array<i64: 2>, scalar_prefetch = 0 : i64, scratch_operands = 0 : i64, tpu.core_type = #tpu.core_type<tc>, window_params = [{transform_indices = @transform_0, window_bounds = array<i64: 32, 16>}, {pipeline_mode = #tpu.pipeline_mode<synchronous>, transform_indices = @transform_1, window_bounds = array<i64: 16, 32>}, {pipeline_mode = #tpu.pipeline_mode<synchronous>, transform_indices = @transform_2, window_bounds = array<i64: 1, 32>}, {pipeline_mode = #tpu.pipeline_mode<synchronous>, transform_indices = @transform_3, window_bounds = array<i64: 32, 32>}, {pipeline_mode = #tpu.pipeline_mode<synchronous>, transform_indices = @transform_4, window_bounds = array<i64: 1, 32>}, {pipeline_mode = #tpu.pipeline_mode<synchronous>, transform_indices = @transform_5, window_bounds = array<i64: 32, 4>}, {pipeline_mode = #tpu.pipeline_mode<synchronous>, transform_indices = @transform_6, window_bounds = array<i64: 1, 4>}, {transform_indices = @transform_7, window_bounds = array<i64: 32, 4>}]} {
    %c0 = arith.constant 0 : index
    %c0_0 = arith.constant 0 : index
    %0 = vector.load %arg1[%c0, %c0_0] : memref<32x16xf32, #tpu.memory_space<vmem>>, vector<32x16xf32>
    %c0_1 = arith.constant 0 : index
    %c0_2 = arith.constant 0 : index
    %1 = vector.load %arg2[%c0_1, %c0_2] : memref<16x32xf32, #tpu.memory_space<vmem>>, vector<16x32xf32>
    %cst = arith.constant dense<0.000000e+00> : vector<32x32xf32>
    %2 = tpu.matmul %0, %1, %cst {dimension_numbers = #tpu.dot_dimension_numbers<[1], [0], [0], [1], [0, 0, 1, 1], [], []>} : vector<32x16xf32>, vector<16x32xf32>, vector<32x32xf32> -> vector<32x32xf32>
    %c0_3 = arith.constant 0 : index
    %c0_4 = arith.constant 0 : index
    %3 = vector.load %arg3[%c0_3, %c0_4] : memref<1x32xf32, #tpu.memory_space<vmem>>, vector<1x32xf32>
    %4 = vector.broadcast %3 : vector<1x32xf32> to vector<32x32xf32>
    %5 = arith.addf %2, %4 : vector<32x32xf32>
    %6 = math.tanh %5 : vector<32x32xf32>
    %c0_5 = arith.constant 0 : index
    %c0_6 = arith.constant 0 : index
    %7 = vector.load %arg4[%c0_5, %c0_6] : memref<32x32xf32, #tpu.memory_space<vmem>>, vector<32x32xf32>
    %cst_7 = arith.constant dense<0.000000e+00> : vector<32x32xf32>
    %8 = tpu.matmul %6, %7, %cst_7 {dimension_numbers = #tpu.dot_dimension_numbers<[1], [0], [0], [1], [0, 0, 1, 1], [], []>} : vector<32x32xf32>, vector<32x32xf32>, vector<32x32xf32> -> vector<32x32xf32>
    %c0_8 = arith.constant 0 : index
    %c0_9 = arith.constant 0 : index
    %9 = vector.load %arg5[%c0_8, %c0_9] : memref<1x32xf32, #tpu.memory_space<vmem>>, vector<1x32xf32>
    %10 = vector.broadcast %9 : vector<1x32xf32> to vector<32x32xf32>
    %11 = arith.addf %8, %10 : vector<32x32xf32>
    %12 = math.tanh %11 : vector<32x32xf32>
    %c0_10 = arith.constant 0 : index
    %c0_11 = arith.constant 0 : index
    %13 = vector.load %arg6[%c0_10, %c0_11] : memref<32x4xf32, #tpu.memory_space<vmem>>, vector<32x4xf32>
    %cst_12 = arith.constant dense<0.000000e+00> : vector<32x4xf32>
    %14 = tpu.matmul %12, %13, %cst_12 {dimension_numbers = #tpu.dot_dimension_numbers<[1], [0], [0], [1], [0, 0, 1, 1], [], []>} : vector<32x32xf32>, vector<32x4xf32>, vector<32x4xf32> -> vector<32x4xf32>
    %c0_13 = arith.constant 0 : index
    %c0_14 = arith.constant 0 : index
    %15 = vector.load %arg7[%c0_13, %c0_14] : memref<1x4xf32, #tpu.memory_space<vmem>>, vector<1x4xf32>
    %16 = vector.broadcast %15 : vector<1x4xf32> to vector<32x4xf32>
    %17 = arith.addf %14, %16 : vector<32x4xf32>
    %c0_15 = arith.constant 0 : index
    %c0_16 = arith.constant 0 : index
    %18 = vector.load %arg8[%c0_15, %c0_16] : memref<32x4xf32, #tpu.memory_space<vmem>>, vector<32x4xf32>
    tpu.vector_store %arg8[%c0_15, %c0_16], %17 {strides = array<i32>} : memref<32x4xf32, #tpu.memory_space<vmem>>, vector<32x4xf32>,
    return
  }
  func.func @transform_0(%arg0: i32) -> (i32, i32) {
    %c0_i32 = arith.constant 0 : i32
    %c0_i32_0 = arith.constant 0 : i32
    return %arg0, %c0_i32 : i32, i32
  }
  func.func @transform_1(%arg0: i32) -> (i32, i32) {
    %c0_i32 = arith.constant 0 : i32
    %c0_i32_0 = arith.constant 0 : i32
    %c0_i32_1 = arith.constant 0 : i32
    return %c0_i32, %c0_i32_0 : i32, i32
  }
  func.func @transform_2(%arg0: i32) -> (i32, i32) {
    %c0_i32 = arith.constant 0 : i32
    %c0_i32_0 = arith.constant 0 : i32
    %c0_i32_1 = arith.constant 0 : i32
    return %c0_i32, %c0_i32_0 : i32, i32
  }
  func.func @transform_3(%arg0: i32) -> (i32, i32) {
    %c0_i32 = arith.constant 0 : i32
    %c0_i32_0 = arith.constant 0 : i32
    %c0_i32_1 = arith.constant 0 : i32
    return %c0_i32, %c0_i32_0 : i32, i32
  }
  func.func @transform_4(%arg0: i32) -> (i32, i32) {
    %c0_i32 = arith.constant 0 : i32
    %c0_i32_0 = arith.constant 0 : i32
    %c0_i32_1 = arith.constant 0 : i32
    return %c0_i32, %c0_i32_0 : i32, i32
  }
  func.func @transform_5(%arg0: i32) -> (i32, i32) {
    %c0_i32 = arith.constant 0 : i32
    %c0_i32_0 = arith.constant 0 : i32
    %c0_i32_1 = arith.constant 0 : i32
    return %c0_i32, %c0_i32_0 : i32, i32
  }
  func.func @transform_6(%arg0: i32) -> (i32, i32) {
    %c0_i32 = arith.constant 0 : i32
    %c0_i32_0 = arith.constant 0 : i32
    %c0_i32_1 = arith.constant 0 : i32
    return %c0_i32, %c0_i32_0 : i32, i32
  }
  func.func @transform_7(%arg0: i32) -> (i32, i32) {
    %c0_i32 = arith.constant 0 : i32
    %c0_i32_0 = arith.constant 0 : i32
    return %arg0, %c0_i32 : i32, i32
  }
}

</mosaic_0001>

<llo_original>
// kernel: tpu_custom_call.1
$region0: #{tpu_custom_call.1}
  #allocation0 [shape = 'u32[]', space=smem, size = 0x4, offset = 0x4, fixed_abs, tag = 'smem constant byte address 0x4 - core index']
  #allocation1 [shape = 'u32[144,128]{1,0:T(1,128)}', space=vmem, size = 0x12000, scoped, tag = 'internal scratch']
  %s0 = inlined_call_operand.vmem [shape: f32[64,16], index: 0, kind: input, shape index: {}]
  %s1 = inlined_call_operand.vmem [shape: f32[16,32], index: 1, kind: input, shape index: {}]
  %s2 = inlined_call_operand.vmem [shape: f32[1,32], index: 2, kind: input, shape index: {}]
  %s3 = inlined_call_operand.vmem [shape: f32[32,32], index: 3, kind: input, shape index: {}]
  %s4 = inlined_call_operand.vmem [shape: f32[1,32], index: 4, kind: input, shape index: {}]
  %s5 = inlined_call_operand.vmem [shape: f32[32,4], index: 5, kind: input, shape index: {}]
  %s6 = inlined_call_operand.vmem [shape: f32[1,4], index: 6, kind: input, shape index: {}]
  %s7 = inlined_call_operand.vmem [shape: f32[64,4], index: 7, kind: output, shape index: {}]
  %s8 = sld [smem:[#allocation0]]
  $region61: #{tpu_custom_call.1} parent=0
    _
  %s10 = ssub.s32 1, %s8
  %s11 = scalar_select 0, %s10, %s8
  loop: start=0, step=1, limit=4
  $region2: #{tpu_custom_call.1} parent=0 // loop_pre_header
    _
  $region3: #{tpu_custom_call.1} parent=0 // loop_header
    %s13 = sphi 0, %s17
    %p14 = scmp.ge.s32.totalorder %s13, 4
    %s23 = sphi 0, %s25
    %s26 = sphi 0, %s23
    %s27 = sphi 0, %s26
    %s43 = sphi 0, %s27
    %s47 = sphi 0, %s47
    %s49 = sphi 0, %s47
    %s50 = sphi 0, %s49
    %s64 = sphi 0, %s50
    %s68 = sphi 0, %s68
    %s70 = sphi 0, %s68
    %s71 = sphi 0, %s70
    %s85 = sphi 0, %s71
    %s89 = sphi 0, %s89
    %s91 = sphi 0, %s89
    %s92 = sphi 0, %s91
    %s106 = sphi 0, %s92
    %s110 = sphi 0, %s110
    %s112 = sphi 0, %s110
    %s113 = sphi 0, %s112
    %s127 = sphi 0, %s113
    %s131 = sphi 0, %s131
    %s133 = sphi 0, %s131
    %s134 = sphi 0, %s133
    %s148 = sphi 0, %s134
    %s152 = sphi 0, %s152
    %s154 = sphi 0, %s152
    %s155 = sphi 0, %s154
    %s169 = sphi 0, %s155
    %s175 = sphi 0, %s177
    %s178 = sphi 0, %s175
    %s179 = sphi 0, %s178
    %s195 = sphi 0, %s179
  $region4: #{tpu_custom_call.1} parent=0 // loop_header_branch
    %16 = sbr.rel (%p14) target = $region8
  $region5: #{tpu_custom_call.1} parent=0 // loop_body
    %s18 = ssub.s32 %s13, 1
    %s19 = ssub.s32 %s13, 2
    %s20 = sadd.s32 %s13, 1
    %s21 = ssub.s32 %s13, %s20
    %p22 = scmp.eq.s32.totalorder %s21, 0
    %s24 = sadd.s32 %s23, 1
    %s25 = scalar_select %p22, %s23, %s24
    %p28 = pneg %p22
    %p29 = scmp.eq.s32.totalorder %s13, 1
    %p30 = por %p28, %p29
    %p31 = scmp.ne.s32.totalorder %s23, %s26
    %p32 = scmp.eq.s32.totalorder %s13, 0
    %p33 = por %p31, %p32
    %p34 = scmp.ne.s32.totalorder %s23, %s26
    %p35 = scmp.eq.s32.totalorder %s18, 1
    %p36 = por %p34, %p35
    %p37 = scmp.ne.s32.totalorder %s26, %s27
    %p38 = scmp.eq.s32.totalorder %s18, 0
    %p39 = por %p37, %p38
    %p40 = scmp.ne.s32.totalorder %s26, %s27
    %p41 = scmp.eq.s32.totalorder %s19, 1
    %p42 = por %p40, %p41
    %p44 = scmp.ne.s32.totalorder %s27, %s43
    %p45 = scmp.eq.s32.totalorder %s19, 0
    %p46 = por %p44, %p45
    %s48 = sadd.s32 %s47, 1
    %p51 = scmp.eq.s32.totalorder %s13, 1
    %p52 = scmp.ne.s32.totalorder %s47, %s49
    %p53 = scmp.eq.s32.totalorder %s13, 0
    %p54 = por %p52, %p53
    %p55 = scmp.ne.s32.totalorder %s47, %s49
    %p56 = scmp.eq.s32.totalorder %s18, 1
    %p57 = por %p55, %p56
    %p58 = scmp.ne.s32.totalorder %s49, %s50
    %p59 = scmp.eq.s32.totalorder %s18, 0
    %p60 = por %p58, %p59
    %p61 = scmp.ne.s32.totalorder %s49, %s50
    %p62 = scmp.eq.s32.totalorder %s19, 1
    %p63 = por %p61, %p62
    %p65 = scmp.ne.s32.totalorder %s50, %s64
    %p66 = scmp.eq.s32.totalorder %s19, 0
    %p67 = por %p65, %p66
    %s69 = sadd.s32 %s68, 1
    %p72 = scmp.eq.s32.totalorder %s13, 1
    %p73 = scmp.ne.s32.totalorder %s68, %s70
    %p74 = scmp.eq.s32.totalorder %s13, 0
    %p75 = por %p73, %p74
    %p76 = scmp.ne.s32.totalorder %s68, %s70
    %p77 = scmp.eq.s32.totalorder %s18, 1
    %p78 = por %p76, %p77
    %p79 = scmp.ne.s32.totalorder %s70, %s71
    %p80 = scmp.eq.s32.totalorder %s18, 0
    %p81 = por %p79, %p80
    %p82 = scmp.ne.s32.totalorder %s70, %s71
    %p83 = scmp.eq.s32.totalorder %s19, 1
    %p84 = por %p82, %p83
    %p86 = scmp.ne.s32.totalorder %s71, %s85
    %p87 = scmp.eq.s32.totalorder %s19, 0
    %p88 = por %p86, %p87
    %s90 = sadd.s32 %s89, 1
    %p93 = scmp.eq.s32.totalorder %s13, 1
    %p94 = scmp.ne.s32.totalorder %s89, %s91
    %p95 = scmp.eq.s32.totalorder %s13, 0
    %p96 = por %p94, %p95
    %p97 = scmp.ne.s32.totalorder %s89, %s91
    %p98 = scmp.eq.s32.totalorder %s18, 1
    %p99 = por %p97, %p98
    %p100 = scmp.ne.s32.totalorder %s91, %s92
    %p101 = scmp.eq.s32.totalorder %s18, 0
    %p102 = por %p100, %p101
    %p103 = scmp.ne.s32.totalorder %s91, %s92
    %p104 = scmp.eq.s32.totalorder %s19, 1
    %p105 = por %p103, %p104
    %p107 = scmp.ne.s32.totalorder %s92, %s106
    %p108 = scmp.eq.s32.totalorder %s19, 0
    %p109 = por %p107, %p108
    %s111 = sadd.s32 %s110, 1
    %p114 = scmp.eq.s32.totalorder %s13, 1
    %p115 = scmp.ne.s32.totalorder %s110, %s112
    %p116 = scmp.eq.s32.totalorder %s13, 0
    %p117 = por %p115, %p116
    %p118 = scmp.ne.s32.totalorder %s110, %s112
    %p119 = scmp.eq.s32.totalorder %s18, 1
    %p120 = por %p118, %p119
    %p121 = scmp.ne.s32.totalorder %s112, %s113
    %p122 = scmp.eq.s32.totalorder %s18, 0
    %p123 = por %p121, %p122
    %p124 = scmp.ne.s32.totalorder %s112, %s113
    %p125 = scmp.eq.s32.totalorder %s19, 1
    %p126 = por %p124, %p125
    %p128 = scmp.ne.s32.totalorder %s113, %s127
    %p129 = scmp.eq.s32.totalorder %s19, 0
    %p130 = por %p128, %p129
    %s132 = sadd.s32 %s131, 1
    %p135 = scmp.eq.s32.totalorder %s13, 1
    %p136 = scmp.ne.s32.totalorder %s131, %s133
    %p137 = scmp.eq.s32.totalorder %s13, 0
    %p138 = por %p136, %p137
    %p139 = scmp.ne.s32.totalorder %s131, %s133
    %p140 = scmp.eq.s32.totalorder %s18, 1
    %p141 = por %p139, %p140
    %p142 = scmp.ne.s32.totalorder %s133, %s134
    %p143 = scmp.eq.s32.totalorder %s18, 0
    %p144 = por %p142, %p143
    %p145 = scmp.ne.s32.totalorder %s133, %s134
    %p146 = scmp.eq.s32.totalorder %s19, 1
    %p147 = por %p145, %p146
    %p149 = scmp.ne.s32.totalorder %s134, %s148
    %p150 = scmp.eq.s32.totalorder %s19, 0
    %p151 = por %p149, %p150
    %s153 = sadd.s32 %s152, 1
    %p156 = scmp.eq.s32.totalorder %s13, 1
    %p157 = scmp.ne.s32.totalorder %s152, %s154
    %p158 = scmp.eq.s32.totalorder %s13, 0
    %p159 = por %p157, %p158
    %p160 = scmp.ne.s32.totalorder %s152, %s154
    %p161 = scmp.eq.s32.totalorder %s18, 1
    %p162 = por %p160, %p161
    %p163 = scmp.ne.s32.totalorder %s154, %s155
    %p164 = scmp.eq.s32.totalorder %s18, 0
    %p165 = por %p163, %p164
    %p166 = scmp.ne.s32.totalorder %s154, %s155
    %p167 = scmp.eq.s32.totalorder %s19, 1
    %p168 = por %p166, %p167
    %p170 = scmp.ne.s32.totalorder %s155, %s169
    %p171 = scmp.eq.s32.totalorder %s19, 0
    %p172 = por %p170, %p171
    %s173 = ssub.s32 %s13, %s20
    %p174 = scmp.eq.s32.totalorder %s173, 0
    %s176 = sadd.s32 %s175, 1
    %s177 = scalar_select %p174, %s175, %s176
    %p180 = pneg %p174
    %p181 = scmp.eq.s32.totalorder %s13, 1
    %p182 = por %p180, %p181
    %p183 = scmp.ne.s32.totalorder %s175, %s178
    %p184 = scmp.eq.s32.totalorder %s13, 0
    %p185 = por %p183, %p184
    %p186 = scmp.ne.s32.totalorder %s175, %s178
    %p187 = scmp.eq.s32.totalorder %s18, 1
    %p188 = por %p186, %p187
    %p189 = scmp.ne.s32.totalorder %s178, %s179
    %p190 = scmp.eq.s32.totalorder %s18, 0
    %p191 = por %p189, %p190
    %p192 = scmp.ne.s32.totalorder %s178, %s179
    %p193 = scmp.eq.s32.totalorder %s19, 1
    %p194 = por %p192, %p193
    %p196 = scmp.ne.s32.totalorder %s179, %s195
    %p197 = scmp.eq.s32.totalorder %s19, 0
    %p198 = por %p196, %p197
    %p199 = scmp.le.s32.totalorder 1, %s13
    %p200 = scmp.lt.s32.totalorder %s13, 3
    %p201 = pnand %p199, %p200
    %p202 = pneg %p201
    // Predicated region
    $region9: #{tpu_custom_call.1} parent=5 // pred_check
      _
    $region10: #{tpu_custom_call.1} parent=5 // pred_check_branch
      %204 = sbr.rel (%p201) target = $region12
    $region11: #{tpu_custom_call.1} parent=5 // pred_region
      %s205 = ssub.s32 %s13, 1
      // Predicated region
      $region13: #{tpu_custom_call.1} parent=11 // pred_check
        %p206 = pneg %p60
      $region14: #{tpu_custom_call.1} parent=11 // pred_check_branch
        %208 = sbr.rel (%p206) target = $region16
      $region15: #{tpu_custom_call.1} parent=11 // pred_region
        _
      $region16: #{tpu_custom_call.1} parent=11 // pred_fallthru
        _
      // Predicated region
      $region17: #{tpu_custom_call.1} parent=11 // pred_check
        %p209 = pneg %p81
      $region18: #{tpu_custom_call.1} parent=11 // pred_check_branch
        %211 = sbr.rel (%p209) target = $region20
      $region19: #{tpu_custom_call.1} parent=11 // pred_region
        _
      $region20: #{tpu_custom_call.1} parent=11 // pred_fallthru
        _
      // Predicated region
      $region21: #{tpu_custom_call.1} parent=11 // pred_check
        %p212 = pneg %p102
      $region22: #{tpu_custom_call.1} parent=11 // pred_check_branch
        %214 = sbr.rel (%p212) target = $region24
      $region23: #{tpu_custom_call.1} parent=11 // pred_region
        _
      $region24: #{tpu_custom_call.1} parent=11 // pred_fallthru
        _
      // Predicated region
      $region25: #{tpu_custom_call.1} parent=11 // pred_check
        %p215 = pneg %p123
      $region26: #{tpu_custom_call.1} parent=11 // pred_check_branch
        %217 = sbr.rel (%p215) target = $region28
      $region27: #{tpu_custom_call.1} parent=11 // pred_region
        _
      $region28: #{tpu_custom_call.1} parent=11 // pred_fallthru
        _
      // Predicated region
      $region29: #{tpu_custom_call.1} parent=11 // pred_check
        %p218 = pneg %p144
      $region30: #{tpu_custom_call.1} parent=11 // pred_check_branch
        %220 = sbr.rel (%p218) target = $region32
      $region31: #{tpu_custom_call.1} parent=11 // pred_region
        _
      $region32: #{tpu_custom_call.1} parent=11 // pred_fallthru
        _
      // Predicated region
      $region33: #{tpu_custom_call.1} parent=11 // pred_check
        %p221 = pneg %p165
      $region34: #{tpu_custom_call.1} parent=11 // pred_check_branch
        %223 = sbr.rel (%p221) target = $region36
      $region35: #{tpu_custom_call.1} parent=11 // pred_region
        _
      $region36: #{tpu_custom_call.1} parent=11 // pred_fallthru
        _
    $region12: #{tpu_custom_call.1} parent=5 // pred_fallthru
      _
    %p224 = scmp.lt.s32.totalorder %s13, 2
    // Predicated region
    $region37: #{tpu_custom_call.1} parent=5 // pred_check
      %p225 = pneg %p224
    $region38: #{tpu_custom_call.1} parent=5 // pred_check_branch
      %227 = sbr.rel (%p225) target = $region40
    $region39: #{tpu_custom_call.1} parent=5 // pred_region
      // Predicated region
      $region41: #{tpu_custom_call.1} parent=39 // pred_check
        %p228 = pneg %p33
      $region42: #{tpu_custom_call.1} parent=39 // pred_check_branch
        %230 = sbr.rel (%p228) target = $region44
      $region43: #{tpu_custom_call.1} parent=39 // pred_region
        %s231 = smul.u32 4, %s13
        %p232 = scmp.lt.s32.totalorder %s231, 7
        %s233 = scalar_select %p232, %s231, 7
        %s234 = smul.addr %s233, 8
        %s235 = scalar_lea.vmem %s0, %s234
        %s236 = smul.u32 4, %s13
      $region44: #{tpu_custom_call.1} parent=39 // pred_fallthru
        _
    $region40: #{tpu_custom_call.1} parent=5 // pred_fallthru
      _
    %p237 = scmp.le.s32.totalorder 1, %s13
    %p238 = scmp.lt.s32.totalorder %s13, 3
    %p239 = pnand %p237, %p238
    %p240 = pneg %p239
    // Predicated region
    $region45: #{tpu_custom_call.1} parent=5 // pred_check
      _
    $region46: #{tpu_custom_call.1} parent=5 // pred_check_branch
      %242 = sbr.rel (%p239) target = $region48
    $region47: #{tpu_custom_call.1} parent=5 // pred_region
      %s243 = ssub.s32 %s13, 1
      %s244 = smul.u32 4, %s18
      %p245 = scmp.lt.s32.totalorder %s244, 7
      %s246 = scalar_select %p245, %s244, 7
      %s247 = smul.addr %s246, 8
      %s248 = scalar_lea.vmem %s0, %s247
      %p249 = pneg %p39
      %p250 = pneg %p36
      %p251 = pneg %p60
      %p252 = pneg %p57
      %p253 = pneg %p81
      %p254 = pneg %p78
      %p255 = pneg %p102
      %p256 = pneg %p99
      %p257 = pneg %p123
      %p258 = pneg %p120
      %p259 = pneg %p144
      %p260 = pneg %p141
      %p261 = pneg %p165
      %p262 = pneg %p162
      %p263 = pneg %p191
      %p264 = pneg %p188
      %s265 = smul.u32 4, %s18
      %p266 = scmp.lt.s32.totalorder %s265, 7
      %s267 = scalar_select %p266, %s265, 7
      %s268 = smul.addr %s267, 8
      %s269 = scalar_lea.vmem %s7, %s268
      %s270 = smul.u32 4, %s18
      %p271 = scmp.lt.s32.totalorder %s270, 7
      %s272 = scalar_select %p271, %s270, 7
      %s273 = smul.addr %s272, 8
      %s274 = scalar_lea.vmem %s0, %s273
      %s275 = smul.u32 4, %s18
      %s276 = smul.u32 4, %s18
      %p277 = scmp.lt.s32.totalorder %s276, 7
      %s278 = scalar_select %p277, %s276, 7
      %s279 = smul.addr %s278, 8
      %s280 = scalar_lea.vmem %s7, %s279
      %s281 = smul.u32 4, %s18
      %v282 = vld [vmem:[%s274] sm:$0xff]
      %v283 = vld [vmem:[%s274 + $0x8] sm:$0xff]
      %v284 = vld [vmem:[%s274 + $0x10] sm:$0xff]
      %v285 = vld [vmem:[%s274 + $0x18] sm:$0xff]
      %v286 = vld [vmem:[%s1] sm:$0xff]
      %v287 = vld [vmem:[%s1 + $0x8] sm:$0xff]
      %v288 = vld [vmem:[%s2] sm:$0x1]
      %v290 = vlaneseq
      %v291 = vshrl.u32 %v290, 7
      %v292 = vsub.s32 0, %v291
      %v293 = vrot.slane %v288, %v292
      %vm295 = vcmask 130048
      %v297 = vsel %vm295, %v282, 0
      %v300 = vsel %vm295, %v283, 0
      %v303 = vsel %vm295, %v284, 0
      %v306 = vsel %vm295, %v285, 0
      %308 = vmatprep.subr.mxu0 0.0
      %309 = vmatpush1.msra.mxu0 0.0
      %310 = vmatprep.subr.mxu0 0.0
      %311 = vmatpush1.msra.mxu0 0.0
      %312 = vmatprep.subr.mxu0 0.0
      %313 = vmatpush1.msra.mxu0 0.0
      %314 = vmatprep.subr.mxu0 0.0
      %315 = vmatpush1.msra.mxu0 0.0
      %316 = vmatprep.subr.mxu0 0.0
      %317 = vmatpush1.msra.mxu0 0.0
      %318 = vmatprep.subr.mxu0 0.0
      %319 = vmatpush1.msra.mxu0 0.0
      %320 = vmatprep.subr.mxu0 0.0
      %321 = vmatpush1.msra.mxu0 0.0
      %322 = vmatprep.subr.mxu0 0.0
      %323 = vmatpush1.msra.mxu0 0.0
      %324 = vmatprep.subr.mxu0 0.0
      %325 = vmatpush1.msra.mxu0 0.0
      %326 = vmatprep.subr.mxu0 0.0
      %327 = vmatpush1.msra.mxu0 0.0
      %328 = vmatprep.subr.mxu0 0.0
      %329 = vmatpush1.msra.mxu0 0.0
      %330 = vmatprep.subr.mxu0 0.0
      %331 = vmatpush1.msra.mxu0 0.0
      %332 = vmatprep.subr.mxu0 0.0
      %333 = vmatpush1.msra.mxu0 0.0
      %334 = vmatprep.subr.mxu0 0.0
      %335 = vmatpush1.msra.mxu0 0.0
      %336 = vmatprep.subr.mxu0 0.0
      %337 = vmatpush1.msra.mxu0 %v287
      %338 = vmatprep.subr.mxu0 0.0
      %339 = vmatpush1.msra.mxu0 %v286
      %340 = vmatprep.subr.mxu0 0.0
      %341 = vmatpush2.msra.mxu0 0.0
      %342 = vmatprep.subr.mxu0 0.0
      %343 = vmatpush2.msra.mxu0 0.0
      %344 = vmatprep.subr.mxu0 0.0
      %345 = vmatpush2.msra.mxu0 0.0
      %346 = vmatprep.subr.mxu0 0.0
      %347 = vmatpush2.msra.mxu0 0.0
      %348 = vmatprep.subr.mxu0 0.0
      %349 = vmatpush2.msra.mxu0 0.0
      %350 = vmatprep.subr.mxu0 0.0
      %351 = vmatpush2.msra.mxu0 0.0
      %352 = vmatprep.subr.mxu0 0.0
      %353 = vmatpush2.msra.mxu0 0.0
      %354 = vmatprep.subr.mxu0 0.0
      %355 = vmatpush2.msra.mxu0 0.0
      %356 = vmatprep.subr.mxu0 0.0
      %357 = vmatpush2.msra.mxu0 0.0
      %358 = vmatprep.subr.mxu0 0.0
      %359 = vmatpush2.msra.mxu0 0.0
      %360 = vmatprep.subr.mxu0 0.0
      %361 = vmatpush2.msra.mxu0 0.0
      %362 = vmatprep.subr.mxu0 0.0
      %363 = vmatpush2.msra.mxu0 0.0
      %364 = vmatprep.subr.mxu0 0.0
      %365 = vmatpush2.msra.mxu0 0.0
      %366 = vmatprep.subr.mxu0 0.0
      %367 = vmatpush2.msra.mxu0 0.0
      %368 = vmatprep.subr.mxu0 0.0
      %369 = vmatpush2.msra.mxu0 0.0
      %370 = vmatprep.subr.mxu0 0.0
      %371 = vmatpush2.msra.mxu0 0.0
      %372 = vmatprep.mubr.f32.mxu0 0.0
      %373 = vmatmul.mubr.f32.gmra.mxu0 %v297
      %v374 = vpop.f32.mrf.mxu0
      %v375 = vadd.f32 %v293, %v374
      %v376 = vpop.f32.mrf.mxu0
      %377 = vmatprep.mubr.f32.mxu0 0.0
      %378 = vmatmul.mubr.f32.gmra.mxu0 %v300
      %v379 = vpop.f32.mrf.mxu0
      %v380 = vadd.f32 %v293, %v379
      %v381 = vpop.f32.mrf.mxu0
      %382 = vmatprep.mubr.f32.mxu0 0.0
      %383 = vmatmul.mubr.f32.gmra.mxu0 %v303
      %v384 = vpop.f32.mrf.mxu0
      %v385 = vadd.f32 %v293, %v384
      %v386 = vpop.f32.mrf.mxu0
      %387 = vmatprep.mubr.f32.mxu0 0.0
      %388 = vmatmul.mubr.f32.gmra.mxu0 %v306
      %v389 = vpop.f32.mrf.mxu0
      %v390 = vadd.f32 %v293, %v389
      %v391 = vpop.f32.mrf.mxu0
      %392 = vdwg.mxu0
      %v393 = vtanh.pop %v375
      %v394 = vtanh.pop %v380
      %v395 = vtanh.pop %v385
      %v396 = vtanh.pop %v390
      %v397 = vld [vmem:[%s3] sm:$0xff]
      %v398 = vld [vmem:[%s3 + $0x8] sm:$0xff]
      %v399 = vld [vmem:[%s3 + $0x10] sm:$0xff]
      %v400 = vld [vmem:[%s3 + $0x18] sm:$0xff]
      %v401 = vld [vmem:[%s4] sm:$0x1]
      %v403 = vlaneseq
      %v404 = vshrl.u32 %v403, 7
      %v405 = vsub.s32 0, %v404
      %v406 = vrot.slane %v401, %v405
      %vm408 = vcmask 261120
      %v410 = vsel %vm408, %v393, 0
      %v413 = vsel %vm408, %v394, 0
      %v416 = vsel %vm408, %v395, 0
      %v419 = vsel %vm408, %v396, 0
      %421 = vmatprep.subr.mxu0 0.0
      %422 = vmatpush1.msra.mxu0 0.0
      %423 = vmatprep.subr.mxu0 0.0
      %424 = vmatpush1.msra.mxu0 0.0
      %425 = vmatprep.subr.mxu0 0.0
      %426 = vmatpush1.msra.mxu0 0.0
      %427 = vmatprep.subr.mxu0 0.0
      %428 = vmatpush1.msra.mxu0 0.0
      %429 = vmatprep.subr.mxu0 0.0
      %430 = vmatpush1.msra.mxu0 0.0
      %431 = vmatprep.subr.mxu0 0.0
      %432 = vmatpush1.msra.mxu0 0.0
      %433 = vmatprep.subr.mxu0 0.0
      %434 = vmatpush1.msra.mxu0 0.0
      %435 = vmatprep.subr.mxu0 0.0
      %436 = vmatpush1.msra.mxu0 0.0
      %437 = vmatprep.subr.mxu0 0.0
      %438 = vmatpush1.msra.mxu0 0.0
      %439 = vmatprep.subr.mxu0 0.0
      %440 = vmatpush1.msra.mxu0 0.0
      %441 = vmatprep.subr.mxu0 0.0
      %442 = vmatpush1.msra.mxu0 0.0
      %443 = vmatprep.subr.mxu0 0.0
      %444 = vmatpush1.msra.mxu0 0.0
      %445 = vmatprep.subr.mxu0 0.0
      %446 = vmatpush1.msra.mxu0 %v400
      %447 = vmatprep.subr.mxu0 0.0
      %448 = vmatpush1.msra.mxu0 %v399
      %449 = vmatprep.subr.mxu0 0.0
      %450 = vmatpush1.msra.mxu0 %v398
      %451 = vmatprep.subr.mxu0 0.0
      %452 = vmatpush1.msra.mxu0 %v397
      %453 = vmatprep.subr.mxu0 0.0
      %454 = vmatpush2.msra.mxu0 0.0
      %455 = vmatprep.subr.mxu0 0.0
      %456 = vmatpush2.msra.mxu0 0.0
      %457 = vmatprep.subr.mxu0 0.0
      %458 = vmatpush2.msra.mxu0 0.0
      %459 = vmatprep.subr.mxu0 0.0
      %460 = vmatpush2.msra.mxu0 0.0
      %461 = vmatprep.subr.mxu0 0.0
      %462 = vmatpush2.msra.mxu0 0.0
      %463 = vmatprep.subr.mxu0 0.0
      %464 = vmatpush2.msra.mxu0 0.0
      %465 = vmatprep.subr.mxu0 0.0
      %466 = vmatpush2.msra.mxu0 0.0
      %467 = vmatprep.subr.mxu0 0.0
      %468 = vmatpush2.msra.mxu0 0.0
      %469 = vmatprep.subr.mxu0 0.0
      %470 = vmatpush2.msra.mxu0 0.0
      %471 = vmatprep.subr.mxu0 0.0
      %472 = vmatpush2.msra.mxu0 0.0
      %473 = vmatprep.subr.mxu0 0.0
      %474 = vmatpush2.msra.mxu0 0.0
      %475 = vmatprep.subr.mxu0 0.0
      %476 = vmatpush2.msra.mxu0 0.0
      %477 = vmatprep.subr.mxu0 0.0
      %478 = vmatpush2.msra.mxu0 0.0
      %479 = vmatprep.subr.mxu0 0.0
      %480 = vmatpush2.msra.mxu0 0.0
      %481 = vmatprep.subr.mxu0 0.0
      %482 = vmatpush2.msra.mxu0 0.0
      %483 = vmatprep.subr.mxu0 0.0
      %484 = vmatpush2.msra.mxu0 0.0
      %485 = vmatprep.mubr.f32.mxu0 0.0
      %486 = vmatmul.mubr.f32.gmra.mxu0 %v410
      %v487 = vpop.f32.mrf.mxu0
      %v488 = vadd.f32 %v406, %v487
      %v489 = vpop.f32.mrf.mxu0
      %490 = vmatprep.mubr.f32.mxu0 0.0
      %491 = vmatmul.mubr.f32.gmra.mxu0 %v413
      %v492 = vpop.f32.mrf.mxu0
      %v493 = vadd.f32 %v406, %v492
      %v494 = vpop.f32.mrf.mxu0
      %495 = vmatprep.mubr.f32.mxu0 0.0
      %496 = vmatmul.mubr.f32.gmra.mxu0 %v416
      %v497 = vpop.f32.mrf.mxu0
      %v498 = vadd.f32 %v406, %v497
      %v499 = vpop.f32.mrf.mxu0
      %500 = vmatprep.mubr.f32.mxu0 0.0
      %501 = vmatmul.mubr.f32.gmra.mxu0 %v419
      %v502 = vpop.f32.mrf.mxu0
      %v503 = vadd.f32 %v406, %v502
      %v504 = vpop.f32.mrf.mxu0
      %505 = vdwg.mxu0
      %v506 = vtanh.pop %v488
      %v507 = vtanh.pop %v493
      %v508 = vtanh.pop %v498
      %v509 = vtanh.pop %v503
      %v510 = vld [vmem:[%s5] sm:$0xff]
      %v511 = vld [vmem:[%s5 + $0x8] sm:$0xff]
      %v512 = vld [vmem:[%s5 + $0x10] sm:$0xff]
      %v513 = vld [vmem:[%s5 + $0x18] sm:$0xff]
      %v514 = vld [vmem:[%s6] sm:$0x1]
      %v516 = vlaneseq
      %v517 = vshrl.u32 %v516, 7
      %v518 = vsub.s32 0, %v517
      %v519 = vrot.slane %v514, %v518
      %v522 = vsel %vm408, %v506, 0
      %v525 = vsel %vm408, %v507, 0
      %v528 = vsel %vm408, %v508, 0
      %v531 = vsel %vm408, %v509, 0
      %533 = vmatprep.subr.mxu0 0.0
      %534 = vmatpush1.msra.mxu0 0.0
      %535 = vmatprep.subr.mxu0 0.0
      %536 = vmatpush1.msra.mxu0 0.0
      %537 = vmatprep.subr.mxu0 0.0
      %538 = vmatpush1.msra.mxu0 0.0
      %539 = vmatprep.subr.mxu0 0.0
      %540 = vmatpush1.msra.mxu0 0.0
      %541 = vmatprep.subr.mxu0 0.0
      %542 = vmatpush1.msra.mxu0 0.0
      %543 = vmatprep.subr.mxu0 0.0
      %544 = vmatpush1.msra.mxu0 0.0
      %545 = vmatprep.subr.mxu0 0.0
      %546 = vmatpush1.msra.mxu0 0.0
      %547 = vmatprep.subr.mxu0 0.0
      %548 = vmatpush1.msra.mxu0 0.0
      %549 = vmatprep.subr.mxu0 0.0
      %550 = vmatpush1.msra.mxu0 0.0
      %551 = vmatprep.subr.mxu0 0.0
      %552 = vmatpush1.msra.mxu0 0.0
      %553 = vmatprep.subr.mxu0 0.0
      %554 = vmatpush1.msra.mxu0 0.0
      %555 = vmatprep.subr.mxu0 0.0
      %556 = vmatpush1.msra.mxu0 0.0
      %557 = vmatprep.subr.mxu0 0.0
      %558 = vmatpush1.msra.mxu0 %v513
      %559 = vmatprep.subr.mxu0 0.0
      %560 = vmatpush1.msra.mxu0 %v512
      %561 = vmatprep.subr.mxu0 0.0
      %562 = vmatpush1.msra.mxu0 %v511
      %563 = vmatprep.subr.mxu0 0.0
      %564 = vmatpush1.msra.mxu0 %v510
      %565 = vmatprep.subr.mxu0 0.0
      %566 = vmatpush2.msra.mxu0 0.0
      %567 = vmatprep.subr.mxu0 0.0
      %568 = vmatpush2.msra.mxu0 0.0
      %569 = vmatprep.subr.mxu0 0.0
      %570 = vmatpush2.msra.mxu0 0.0
      %571 = vmatprep.subr.mxu0 0.0
      %572 = vmatpush2.msra.mxu0 0.0
      %573 = vmatprep.subr.mxu0 0.0
      %574 = vmatpush2.msra.mxu0 0.0
      %575 = vmatprep.subr.mxu0 0.0
      %576 = vmatpush2.msra.mxu0 0.0
      %577 = vmatprep.subr.mxu0 0.0
      %578 = vmatpush2.msra.mxu0 0.0
      %579 = vmatprep.subr.mxu0 0.0
      %580 = vmatpush2.msra.mxu0 0.0
      %581 = vmatprep.subr.mxu0 0.0
      %582 = vmatpush2.msra.mxu0 0.0
      %583 = vmatprep.subr.mxu0 0.0
      %584 = vmatpush2.msra.mxu0 0.0
      %585 = vmatprep.subr.mxu0 0.0
      %586 = vmatpush2.msra.mxu0 0.0
      %587 = vmatprep.subr.mxu0 0.0
      %588 = vmatpush2.msra.mxu0 0.0
      %589 = vmatprep.subr.mxu0 0.0
      %590 = vmatpush2.msra.mxu0 0.0
      %591 = vmatprep.subr.mxu0 0.0
      %592 = vmatpush2.msra.mxu0 0.0
      %593 = vmatprep.subr.mxu0 0.0
      %594 = vmatpush2.msra.mxu0 0.0
      %595 = vmatprep.subr.mxu0 0.0
      %596 = vmatpush2.msra.mxu0 0.0
      %597 = vmatprep.mubr.f32.mxu0 0.0
      %598 = vmatmul.mubr.f32.gmra.mxu0 %v522
      %v599 = vpop.f32.mrf.mxu0
      %v600 = vadd.f32 %v519, %v599
      %v601 = vpop.f32.mrf.mxu0
      %602 = vmatprep.mubr.f32.mxu0 0.0
      %603 = vmatmul.mubr.f32.gmra.mxu0 %v525
      %v604 = vpop.f32.mrf.mxu0
      %v605 = vadd.f32 %v519, %v604
      %v606 = vpop.f32.mrf.mxu0
      %607 = vmatprep.mubr.f32.mxu0 0.0
      %608 = vmatmul.mubr.f32.gmra.mxu0 %v528
      %v609 = vpop.f32.mrf.mxu0
      %v610 = vadd.f32 %v519, %v609
      %v611 = vpop.f32.mrf.mxu0
      %612 = vmatprep.mubr.f32.mxu0 0.0
      %613 = vmatmul.mubr.f32.gmra.mxu0 %v531
      %v614 = vpop.f32.mrf.mxu0
      %v615 = vadd.f32 %v519, %v614
      %v616 = vpop.f32.mrf.mxu0
      %617 = vdwg.mxu0
      %vm618 = vcmask 31744
      %619 = vst.msk [vmem:[%s280] sm:$0xff] %vm618, %v600
      %620 = vst.msk [vmem:[%s280 + $0x8] sm:$0xff] %vm618, %v605
      %621 = vst.msk [vmem:[%s280 + $0x10] sm:$0xff] %vm618, %v610
      %622 = vst.msk [vmem:[%s280 + $0x18] sm:$0xff] %vm618, %v615
      %s623 = smul.u32 4, %s18
      %p624 = scmp.lt.s32.totalorder %s623, 7
      %s625 = scalar_select %p624, %s623, 7
      %s626 = smul.addr %s625, 8
      %s627 = scalar_lea.vmem %s7, %s626
      // Predicated region
      $region49: #{tpu_custom_call.1} parent=47 // pred_check
        %p628 = pneg %p188
      $region50: #{tpu_custom_call.1} parent=47 // pred_check_branch
        %630 = sbr.rel (%p628) target = $region52
      $region51: #{tpu_custom_call.1} parent=47 // pred_region
        %s631 = smul.u32 4, %s18
      $region52: #{tpu_custom_call.1} parent=47 // pred_fallthru
        _
    $region48: #{tpu_custom_call.1} parent=5 // pred_fallthru
      _
    %p632 = scmp.le.s32.totalorder 2, %s13
    // Predicated region
    $region53: #{tpu_custom_call.1} parent=5 // pred_check
      %p633 = pneg %p632
    $region54: #{tpu_custom_call.1} parent=5 // pred_check_branch
      %635 = sbr.rel (%p633) target = $region56
    $region55: #{tpu_custom_call.1} parent=5 // pred_region
      %s636 = ssub.s32 %s13, 2
      // Predicated region
      $region57: #{tpu_custom_call.1} parent=55 // pred_check
        %p637 = pneg %p194
      $region58: #{tpu_custom_call.1} parent=55 // pred_check_branch
        %639 = sbr.rel (%p637) target = $region60
      $region59: #{tpu_custom_call.1} parent=55 // pred_region
        %s640 = smul.u32 4, %s19
        %p641 = scmp.lt.s32.totalorder %s640, 7
        %s642 = scalar_select %p641, %s640, 7
        %s643 = smul.addr %s642, 8
        %s644 = scalar_lea.vmem %s7, %s643
      $region60: #{tpu_custom_call.1} parent=55 // pred_fallthru
        _
    $region56: #{tpu_custom_call.1} parent=5 // pred_fallthru
      _
  $region6: #{tpu_custom_call.1} parent=0 // loop_footer
    %s17 = sadd.s32 1, %s13
  $region7: #{tpu_custom_call.1} parent=0 // loop_footer_branch
    %12 = sbr.rel target = $region3
  $region8: #{tpu_custom_call.1} parent=0 // loop_exit
    _

</llo_original>
